<compile_context>
chip_gen: v5e
topology: v5e:2x2
jax: 0.10.0
libtpu: 0.0.40
codegen_flags: <defaults>
</compile_context>

<pallas_src>
import functools
import math

import jax
import jax.numpy as jnp
from jax.experimental import pallas as pl
from jax.experimental.pallas import tpu as pltpu

NUM_NLIN_LAYERS = 5  # LearnableNlinCore(num_layers=5)


def _nlin_core_kernel(x_ref, w_ref, b_ref, o_ref, *, num_layers, matmul_dtype):
    # x_ref: (tn, W) f32 packed activation rows.  The ragged edge block may contain unspecified
    #        rows; that is safe because the block-diagonal matmul keeps rows independent and the
    #        edge store is masked by Pallas.
    # w_ref: (L, W, W) block-diagonal weights in matmul_dtype (resident in VMEM).
    # b_ref: (L, 1, W) tiled biases, f32 (resident).
    # o_ref: (tn, W) f32.
    h = x_ref[...]
    for i in range(num_layers):  # static unroll: 5 x (Linear + SiLU) in one kernel
        y = jnp.dot(h.astype(matmul_dtype), w_ref[i],
                    preferred_element_type=jnp.float32) + b_ref[i]
        # SiLU with a single transcendental per element: sigmoid(y) = 0.5*(tanh(0.5*y)+1)
        h = 0.5 * y * (jnp.tanh(0.5 * y) + 1.0)
    o_ref[...] = h.astype(o_ref.dtype)


def learnable_nlin_core(x, w, b, *, row_tile=2048, matmul_dtype=jnp.bfloat16):
    """LearnableNlinCore forward.

    x: (B, T, C, 2) float32
    w: (L, 2C, 2C) torch-layout Linear weights (per layer: y = x @ w[l].T + b[l])
    b: (L, 2C) biases
    returns: (B, T, C, 2) float32

    matmul_dtype=bf16 (default) keeps f32 accumulation and f32 SiLU; only the K=8 contraction
    operands are bf16, which loosens precision vs the f32 PyTorch reference only slightly
    (well inside the 5e-2 tolerance used below).  Pass matmul_dtype=jnp.float32 for bit-tighter
    numerics at the cost of ~3x MXU passes on v5e.
    """
    B, T, C, two = x.shape
    assert two == 2
    D = 2 * C
    L = w.shape[0]
    assert w.shape == (L, D, D) and b.shape == (L, D)

    N = B * T
    # Pack G consecutive length-D rows into one lane-dense row of width W_lane = lcm(D, 128).
    W_lane = D * (128 // math.gcd(D, 128))
    G = W_lane // D
    pad_rows = (-N) % G            # pad only to a multiple of G (0 in the common case)
    Ng = (N + pad_rows) // G       # packed rows

    xf = x.reshape(N, D).astype(jnp.float32)
    if pad_rows:
        xf = jnp.pad(xf, ((0, pad_rows), (0, 0)))
    xg = xf.reshape(Ng, W_lane)

    # Row tile: multiple of 8 sublanes (f32 activations at the call boundary).  The ragged last
    # block (Ng not a multiple of tn) is masked by Pallas — no host padding to a grid multiple.
    tn = -(-min(row_tile, Ng) // 8) * 8
    num_tiles = pl.cdiv(Ng, tn)    # at real sizes this is >=2, so v7x's two TCs both get work

    # Block-diagonal weight: packed_row @ block_diag(w^T, ... G copies ...) == per-row Linear.
    w_t = jnp.transpose(w, (0, 2, 1)).astype(jnp.float32)                      # (L, D, D)
    w_big = jnp.einsum("gh,lde->lgdhe", jnp.eye(G, dtype=jnp.float32), w_t)
    w_big = w_big.reshape(L, W_lane, W_lane).astype(matmul_dtype)
    b_big = jnp.tile(b.astype(jnp.float32), (1, G)).reshape(L, 1, W_lane)

    # VMEM budget: double-buffered in/out tiles + resident weights/bias + in-kernel temporaries
    # for the 5 unrolled layers (y / SiLU temps, pre-store copy, bf16 cast copy), 2x slack,
    # capped at 48 MiB so v7x (64 MiB physical) keeps compiler-internal headroom.
    wb = jnp.dtype(matmul_dtype).itemsize
    tile_f32 = tn * W_lane * 4
    est = (2 * 2 * tile_f32                                # pipelined in + out (double-buffered)
           + 2 * L * (W_lane * W_lane * wb + W_lane * 4)   # resident weights + biases
           + 4 * tile_f32 + tn * W_lane * wb)              # in-kernel temporaries
    vmem_limit = int(min(max(2 * est, 4 << 20), 48 << 20))

    cost = pl.CostEstimate(
        flops=2 * Ng * W_lane * W_lane * L,
        transcendentals=Ng * W_lane * L,
        bytes_accessed=2 * Ng * W_lane * 4 + L * (W_lane * W_lane * wb + W_lane * 4),
    )

    kernel = functools.partial(_nlin_core_kernel, num_layers=L, matmul_dtype=matmul_dtype)
    out_g = pl.pallas_call(
        kernel,
        out_shape=jax.ShapeDtypeStruct((Ng, W_lane), jnp.float32),
        grid=(num_tiles,),
        in_specs=[
            pl.BlockSpec((tn, W_lane), lambda i: (i, 0)),             # streamed activations
            pl.BlockSpec((L, W_lane, W_lane), lambda i: (0, 0, 0)),   # resident weights
            pl.BlockSpec((L, 1, W_lane), lambda i: (0, 0, 0)),        # resident biases
        ],
        out_specs=pl.BlockSpec((tn, W_lane), lambda i: (i, 0)),
        compiler_params=pltpu.CompilerParams(
            dimension_semantics=("parallel",),   # independent row tiles -> megacore on v7x
            vmem_limit_bytes=vmem_limit,
        ),
        cost_estimate=cost,
    )(xg, w_big, b_big)

    out = out_g.reshape(Ng * G, D)
    if pad_rows:
        out = out[:N]                            # only materialized when B*T % G != 0
    return out.reshape(B, T, C, 2)


def ref_forward(x, w, b):
    """Pure-JAX reference matching the PyTorch module exactly (f32 throughout)."""
    B, T, C, _ = x.shape
    h = x.reshape(B * T, 2 * C)
    for l in range(w.shape[0]):
        h = h @ w[l].T + b[l]
        h = h * jax.nn.sigmoid(h)  # SiLU
    return h.reshape(B, T, C, 2)


if __name__ == "__main__":
    B, T, C = 2, 100, 4  # x: (batch, time, n_channels, 2) per MatrixNonlinLayer.forward
    L = NUM_NLIN_LAYERS
    D = 2 * C

    key = jax.random.PRNGKey(0)
    kx, kw, kb = jax.random.split(key, 3)
    x = jax.random.normal(kx, (B, T, C, 2), jnp.float32)

    # Module init is identity weight / zero bias (_initialize_as_identity); perturb slightly so
    # the matmul + bias path is actually exercised (forward semantics are init-agnostic).
    w = (jnp.tile(jnp.eye(D, dtype=jnp.float32)[None], (L, 1, 1))
         + 0.05 * jax.random.normal(kw, (L, D, D), jnp.float32))
    b = 0.05 * jax.random.normal(kb, (L, D), jnp.float32)

    ref = ref_forward(x, w, b)

    # 1) Tiny row_tile: forces a multi-step grid plus a ragged (masked) last block.
    out_small = jax.block_until_ready(
        jax.jit(functools.partial(learnable_nlin_core, row_tile=8))(x, w, b))
    # 2) Default configuration (large tile, bf16 matmul operands).
    out = jax.block_until_ready(jax.jit(learnable_nlin_core)(x, w, b))

    for o in (out_small, out):
        assert o.shape == (B, T, C, 2), o.shape
        assert bool(jnp.all(jnp.isfinite(o)))
        max_err = float(jnp.max(jnp.abs(o - ref)))
        # Tolerance accommodates bf16 MXU operands (f32 accumulation); structural bugs (wrong
        # block-diagonal / bias tiling / row packing / edge masking) would give O(1) errors.
        assert jnp.allclose(o, ref, rtol=5e-2, atol=5e-2), f"max_err={max_err}"

    print("KERNEL_OK")
</pallas_src>

<mosaic_0001>
module attributes {stable_mosaic.version = 11 : i64} {
  func.func @_nlin_core_kernel(%arg0: i32, %arg1: memref<8x128xf32, #tpu.memory_space<vmem>>, %arg2: memref<5x128x128xbf16, #tpu.memory_space<vmem>>, %arg3: memref<5x1x128xf32, #tpu.memory_space<vmem>>, %arg4: memref<8x128xf32, #tpu.memory_space<vmem>>) attributes {dimension_semantics = [#tpu.dimension_semantics<parallel>], iteration_bounds = array<i64: 2>, scalar_prefetch = 0 : i64, scratch_operands = 0 : i64, tpu.core_type = #tpu.core_type<tc>, window_params = [{transform_indices = @transform_0, window_bounds = array<i64: 8, 128>}, {pipeline_mode = #tpu.pipeline_mode<synchronous>, transform_indices = @transform_1, window_bounds = array<i64: 5, 128, 128>}, {pipeline_mode = #tpu.pipeline_mode<synchronous>, transform_indices = @transform_2, window_bounds = array<i64: 5, 1, 128>}, {transform_indices = @transform_3, window_bounds = array<i64: 8, 128>}]} {
    %c0 = arith.constant 0 : index
    %c0_0 = arith.constant 0 : index
    %0 = vector.load %arg1[%c0, %c0_0] : memref<8x128xf32, #tpu.memory_space<vmem>>, vector<8x128xf32>
    %1 = arith.truncf %0 : vector<8x128xf32> to vector<8x128xbf16>
    %c0_1 = arith.constant 0 : index
    %c0_2 = arith.constant 0 : index
    %c0_3 = arith.constant 0 : index
    %2 = vector.load %arg2[%c0_1, %c0_2, %c0_3] : memref<5x128x128xbf16, #tpu.memory_space<vmem>>, vector<1x128x128xbf16>
    %3 = vector.shape_cast %2 : vector<1x128x128xbf16> to vector<128x128xbf16>
    %cst = arith.constant dense<0.000000e+00> : vector<8x128xf32>
    %4 = tpu.matmul %1, %3, %cst {dimension_numbers = #tpu.dot_dimension_numbers<[1], [0], [0], [1], [0, 0, 1, 1], [], []>} : vector<8x128xbf16>, vector<128x128xbf16>, vector<8x128xf32> -> vector<8x128xf32>
    %c0_4 = arith.constant 0 : index
    %c0_5 = arith.constant 0 : index
    %c0_6 = arith.constant 0 : index
    %5 = vector.load %arg3[%c0_4, %c0_5, %c0_6] : memref<5x1x128xf32, #tpu.memory_space<vmem>>, vector<1x1x128xf32>
    %6 = vector.shape_cast %5 : vector<1x1x128xf32> to vector<1x128xf32>
    %7 = vector.broadcast %6 : vector<1x128xf32> to vector<8x128xf32>
    %8 = arith.addf %4, %7 : vector<8x128xf32>
    %cst_7 = arith.constant 5.000000e-01 : f32
    %9 = vector.broadcast %cst_7 : f32 to vector<8x128xf32>
    %10 = arith.mulf %9, %8 : vector<8x128xf32>
    %cst_8 = arith.constant 5.000000e-01 : f32
    %11 = vector.broadcast %cst_8 : f32 to vector<8x128xf32>
    %12 = arith.mulf %11, %8 : vector<8x128xf32>
    %13 = math.tanh %12 : vector<8x128xf32>
    %cst_9 = arith.constant 1.000000e+00 : f32
    %14 = vector.broadcast %cst_9 : f32 to vector<8x128xf32>
    %15 = arith.addf %13, %14 : vector<8x128xf32>
    %16 = arith.mulf %10, %15 : vector<8x128xf32>
    %17 = arith.truncf %16 : vector<8x128xf32> to vector<8x128xbf16>
    %c1 = arith.constant 1 : index
    %c0_10 = arith.constant 0 : index
    %c0_11 = arith.constant 0 : index
    %18 = vector.load %arg2[%c1, %c0_10, %c0_11] : memref<5x128x128xbf16, #tpu.memory_space<vmem>>, vector<1x128x128xbf16>
    %19 = vector.shape_cast %18 : vector<1x128x128xbf16> to vector<128x128xbf16>
    %cst_12 = arith.constant dense<0.000000e+00> : vector<8x128xf32>
    %20 = tpu.matmul %17, %19, %cst_12 {dimension_numbers = #tpu.dot_dimension_numbers<[1], [0], [0], [1], [0, 0, 1, 1], [], []>} : vector<8x128xbf16>, vector<128x128xbf16>, vector<8x128xf32> -> vector<8x128xf32>
    %c1_13 = arith.constant 1 : index
    %c0_14 = arith.constant 0 : index
    %c0_15 = arith.constant 0 : index
    %21 = vector.load %arg3[%c1_13, %c0_14, %c0_15] : memref<5x1x128xf32, #tpu.memory_space<vmem>>, vector<1x1x128xf32>
    %22 = vector.shape_cast %21 : vector<1x1x128xf32> to vector<1x128xf32>
    %23 = vector.broadcast %22 : vector<1x128xf32> to vector<8x128xf32>
    %24 = arith.addf %20, %23 : vector<8x128xf32>
    %cst_16 = arith.constant 5.000000e-01 : f32
    %25 = vector.broadcast %cst_16 : f32 to vector<8x128xf32>
    %26 = arith.mulf %25, %24 : vector<8x128xf32>
    %cst_17 = arith.constant 5.000000e-01 : f32
    %27 = vector.broadcast %cst_17 : f32 to vector<8x128xf32>
    %28 = arith.mulf %27, %24 : vector<8x128xf32>
    %29 = math.tanh %28 : vector<8x128xf32>
    %cst_18 = arith.constant 1.000000e+00 : f32
    %30 = vector.broadcast %cst_18 : f32 to vector<8x128xf32>
    %31 = arith.addf %29, %30 : vector<8x128xf32>
    %32 = arith.mulf %26, %31 : vector<8x128xf32>
    %33 = arith.truncf %32 : vector<8x128xf32> to vector<8x128xbf16>
    %c2 = arith.constant 2 : index
    %c0_19 = arith.constant 0 : index
    %c0_20 = arith.constant 0 : index
    %34 = vector.load %arg2[%c2, %c0_19, %c0_20] : memref<5x128x128xbf16, #tpu.memory_space<vmem>>, vector<1x128x128xbf16>
    %35 = vector.shape_cast %34 : vector<1x128x128xbf16> to vector<128x128xbf16>
    %cst_21 = arith.constant dense<0.000000e+00> : vector<8x128xf32>
    %36 = tpu.matmul %33, %35, %cst_21 {dimension_numbers = #tpu.dot_dimension_numbers<[1], [0], [0], [1], [0, 0, 1, 1], [], []>} : vector<8x128xbf16>, vector<128x128xbf16>, vector<8x128xf32> -> vector<8x128xf32>
    %c2_22 = arith.constant 2 : index
    %c0_23 = arith.constant 0 : index
    %c0_24 = arith.constant 0 : index
    %37 = vector.load %arg3[%c2_22, %c0_23, %c0_24] : memref<5x1x128xf32, #tpu.memory_space<vmem>>, vector<1x1x128xf32>
    %38 = vector.shape_cast %37 : vector<1x1x128xf32> to vector<1x128xf32>
    %39 = vector.broadcast %38 : vector<1x128xf32> to vector<8x128xf32>
    %40 = arith.addf %36, %39 : vector<8x128xf32>
    %cst_25 = arith.constant 5.000000e-01 : f32
    %41 = vector.broadcast %cst_25 : f32 to vector<8x128xf32>
    %42 = arith.mulf %41, %40 : vector<8x128xf32>
    %cst_26 = arith.constant 5.000000e-01 : f32
    %43 = vector.broadcast %cst_26 : f32 to vector<8x128xf32>
    %44 = arith.mulf %43, %40 : vector<8x128xf32>
    %45 = math.tanh %44 : vector<8x128xf32>
    %cst_27 = arith.constant 1.000000e+00 : f32
    %46 = vector.broadcast %cst_27 : f32 to vector<8x128xf32>
    %47 = arith.addf %45, %46 : vector<8x128xf32>
    %48 = arith.mulf %42, %47 : vector<8x128xf32>
    %49 = arith.truncf %48 : vector<8x128xf32> to vector<8x128xbf16>
    %c3 = arith.constant 3 : index
    %c0_28 = arith.constant 0 : index
    %c0_29 = arith.constant 0 : index
    %50 = vector.load %arg2[%c3, %c0_28, %c0_29] : memref<5x128x128xbf16, #tpu.memory_space<vmem>>, vector<1x128x128xbf16>
    %51 = vector.shape_cast %50 : vector<1x128x128xbf16> to vector<128x128xbf16>
    %cst_30 = arith.constant dense<0.000000e+00> : vector<8x128xf32>
    %52 = tpu.matmul %49, %51, %cst_30 {dimension_numbers = #tpu.dot_dimension_numbers<[1], [0], [0], [1], [0, 0, 1, 1], [], []>} : vector<8x128xbf16>, vector<128x128xbf16>, vector<8x128xf32> -> vector<8x128xf32>
    %c3_31 = arith.constant 3 : index
    %c0_32 = arith.constant 0 : index
    %c0_33 = arith.constant 0 : index
    %53 = vector.load %arg3[%c3_31, %c0_32, %c0_33] : memref<5x1x128xf32, #tpu.memory_space<vmem>>, vector<1x1x128xf32>
    %54 = vector.shape_cast %53 : vector<1x1x128xf32> to vector<1x128xf32>
    %55 = vector.broadcast %54 : vector<1x128xf32> to vector<8x128xf32>
    %56 = arith.addf %52, %55 : vector<8x128xf32>
    %cst_34 = arith.constant 5.000000e-01 : f32
    %57 = vector.broadcast %cst_34 : f32 to vector<8x128xf32>
    %58 = arith.mulf %57, %56 : vector<8x128xf32>
    %cst_35 = arith.constant 5.000000e-01 : f32
    %59 = vector.broadcast %cst_35 : f32 to vector<8x128xf32>
    %60 = arith.mulf %59, %56 : vector<8x128xf32>
    %61 = math.tanh %60 : vector<8x128xf32>
    %cst_36 = arith.constant 1.000000e+00 : f32
    %62 = vector.broadcast %cst_36 : f32 to vector<8x128xf32>
    %63 = arith.addf %61, %62 : vector<8x128xf32>
    %64 = arith.mulf %58, %63 : vector<8x128xf32>
    %65 = arith.truncf %64 : vector<8x128xf32> to vector<8x128xbf16>
    %c4 = arith.constant 4 : index
    %c0_37 = arith.constant 0 : index
    %c0_38 = arith.constant 0 : index
    %66 = vector.load %arg2[%c4, %c0_37, %c0_38] : memref<5x128x128xbf16, #tpu.memory_space<vmem>>, vector<1x128x128xbf16>
    %67 = vector.shape_cast %66 : vector<1x128x128xbf16> to vector<128x128xbf16>
    %cst_39 = arith.constant dense<0.000000e+00> : vector<8x128xf32>
    %68 = tpu.matmul %65, %67, %cst_39 {dimension_numbers = #tpu.dot_dimension_numbers<[1], [0], [0], [1], [0, 0, 1, 1], [], []>} : vector<8x128xbf16>, vector<128x128xbf16>, vector<8x128xf32> -> vector<8x128xf32>
    %c4_40 = arith.constant 4 : index
    %c0_41 = arith.constant 0 : index
    %c0_42 = arith.constant 0 : index
    %69 = vector.load %arg3[%c4_40, %c0_41, %c0_42] : memref<5x1x128xf32, #tpu.memory_space<vmem>>, vector<1x1x128xf32>
    %70 = vector.shape_cast %69 : vector<1x1x128xf32> to vector<1x128xf32>
    %71 = vector.broadcast %70 : vector<1x128xf32> to vector<8x128xf32>
    %72 = arith.addf %68, %71 : vector<8x128xf32>
    %cst_43 = arith.constant 5.000000e-01 : f32
    %73 = vector.broadcast %cst_43 : f32 to vector<8x128xf32>
    %74 = arith.mulf %73, %72 : vector<8x128xf32>
    %cst_44 = arith.constant 5.000000e-01 : f32
    %75 = vector.broadcast %cst_44 : f32 to vector<8x128xf32>
    %76 = arith.mulf %75, %72 : vector<8x128xf32>
    %77 = math.tanh %76 : vector<8x128xf32>
    %cst_45 = arith.constant 1.000000e+00 : f32
    %78 = vector.broadcast %cst_45 : f32 to vector<8x128xf32>
    %79 = arith.addf %77, %78 : vector<8x128xf32>
    %80 = arith.mulf %74, %79 : vector<8x128xf32>
    %c0_46 = arith.constant 0 : index
    %c0_47 = arith.constant 0 : index
    %81 = vector.load %arg4[%c0_46, %c0_47] : memref<8x128xf32, #tpu.memory_space<vmem>>, vector<8x128xf32>
    tpu.vector_store %arg4[%c0_46, %c0_47], %80 {strides = array<i32>} : memref<8x128xf32, #tpu.memory_space<vmem>>, vector<8x128xf32>,
    return
  }
  func.func @transform_0(%arg0: i32) -> (i32, i32) {
    %c0_i32 = arith.constant 0 : i32
    %c0_i32_0 = arith.constant 0 : i32
    return %arg0, %c0_i32 : i32, i32
  }
  func.func @transform_1(%arg0: i32) -> (i32, i32, i32) {
    %c0_i32 = arith.constant 0 : i32
    %c0_i32_0 = arith.constant 0 : i32
    %c0_i32_1 = arith.constant 0 : i32
    %c0_i32_2 = arith.constant 0 : i32
    return %c0_i32, %c0_i32_0, %c0_i32_1 : i32, i32, i32
  }
  func.func @transform_2(%arg0: i32) -> (i32, i32, i32) {
    %c0_i32 = arith.constant 0 : i32
    %c0_i32_0 = arith.constant 0 : i32
    %c0_i32_1 = arith.constant 0 : i32
    %c0_i32_2 = arith.constant 0 : i32
    return %c0_i32, %c0_i32_0, %c0_i32_1 : i32, i32, i32
  }
  func.func @transform_3(%arg0: i32) -> (i32, i32) {
    %c0_i32 = arith.constant 0 : i32
    %c0_i32_0 = arith.constant 0 : i32
    return %arg0, %c0_i32 : i32, i32
  }
}

</mosaic_0001>

<llo_original>
// kernel: learnable_nlin_core.1
$region0: #{learnable_nlin_core.1}
  #allocation0 [shape = 'u32[]', space=smem, size = 0x4, offset = 0x4, fixed_abs, tag = 'smem constant byte address 0x4 - core index']
  #allocation1 [shape = 'u32[72,128]{1,0:T(1,128)}', space=vmem, size = 0x9000, scoped, tag = 'internal scratch']
  %s0 = inlined_call_operand.vmem [shape: f32[13,128], index: 0, kind: input, shape index: {}]
  %s1 = inlined_call_operand.vmem [shape: bf16[5,128,128], index: 1, kind: input, shape index: {}]
  %s2 = inlined_call_operand.vmem [shape: f32[5,1,128], index: 2, kind: input, shape index: {}]
  %s3 = inlined_call_operand.vmem [shape: f32[13,128], index: 3, kind: output, shape index: {}]
  %s4 = sld [smem:[#allocation0]]
  $region45: #{learnable_nlin_core.1} parent=0
    _
  %s6 = ssub.s32 1, %s4
  %s7 = scalar_select 0, %s6, %s4
  loop: start=0, step=1, limit=4
  $region2: #{learnable_nlin_core.1} parent=0 // loop_pre_header
    _
  $region3: #{learnable_nlin_core.1} parent=0 // loop_header
    %s9 = sphi 0, %s13
    %p10 = scmp.ge.s32.totalorder %s9, 4
    %s19 = sphi 0, %s21
    %s22 = sphi 0, %s19
    %s23 = sphi 0, %s22
    %s39 = sphi 0, %s23
    %s43 = sphi 0, %s43
    %s45 = sphi 0, %s43
    %s46 = sphi 0, %s45
    %s60 = sphi 0, %s46
    %s64 = sphi 0, %s64
    %s66 = sphi 0, %s64
    %s67 = sphi 0, %s66
    %s81 = sphi 0, %s67
    %s87 = sphi 0, %s89
    %s90 = sphi 0, %s87
    %s91 = sphi 0, %s90
    %s107 = sphi 0, %s91
  $region4: #{learnable_nlin_core.1} parent=0 // loop_header_branch
    %12 = sbr.rel (%p10) target = $region8
  $region5: #{learnable_nlin_core.1} parent=0 // loop_body
    %s14 = ssub.s32 %s9, 1
    %s15 = ssub.s32 %s9, 2
    %s16 = sadd.s32 %s9, 1
    %s17 = ssub.s32 %s9, %s16
    %p18 = scmp.eq.s32.totalorder %s17, 0
    %s20 = sadd.s32 %s19, 1
    %s21 = scalar_select %p18, %s19, %s20
    %p24 = pneg %p18
    %p25 = scmp.eq.s32.totalorder %s9, 1
    %p26 = por %p24, %p25
    %p27 = scmp.ne.s32.totalorder %s19, %s22
    %p28 = scmp.eq.s32.totalorder %s9, 0
    %p29 = por %p27, %p28
    %p30 = scmp.ne.s32.totalorder %s19, %s22
    %p31 = scmp.eq.s32.totalorder %s14, 1
    %p32 = por %p30, %p31
    %p33 = scmp.ne.s32.totalorder %s22, %s23
    %p34 = scmp.eq.s32.totalorder %s14, 0
    %p35 = por %p33, %p34
    %p36 = scmp.ne.s32.totalorder %s22, %s23
    %p37 = scmp.eq.s32.totalorder %s15, 1
    %p38 = por %p36, %p37
    %p40 = scmp.ne.s32.totalorder %s23, %s39
    %p41 = scmp.eq.s32.totalorder %s15, 0
    %p42 = por %p40, %p41
    %s44 = sadd.s32 %s43, 1
    %p47 = scmp.eq.s32.totalorder %s9, 1
    %p48 = scmp.ne.s32.totalorder %s43, %s45
    %p49 = scmp.eq.s32.totalorder %s9, 0
    %p50 = por %p48, %p49
    %p51 = scmp.ne.s32.totalorder %s43, %s45
    %p52 = scmp.eq.s32.totalorder %s14, 1
    %p53 = por %p51, %p52
    %p54 = scmp.ne.s32.totalorder %s45, %s46
    %p55 = scmp.eq.s32.totalorder %s14, 0
    %p56 = por %p54, %p55
    %p57 = scmp.ne.s32.totalorder %s45, %s46
    %p58 = scmp.eq.s32.totalorder %s15, 1
    %p59 = por %p57, %p58
    %p61 = scmp.ne.s32.totalorder %s46, %s60
    %p62 = scmp.eq.s32.totalorder %s15, 0
    %p63 = por %p61, %p62
    %s65 = sadd.s32 %s64, 1
    %p68 = scmp.eq.s32.totalorder %s9, 1
    %p69 = scmp.ne.s32.totalorder %s64, %s66
    %p70 = scmp.eq.s32.totalorder %s9, 0
    %p71 = por %p69, %p70
    %p72 = scmp.ne.s32.totalorder %s64, %s66
    %p73 = scmp.eq.s32.totalorder %s14, 1
    %p74 = por %p72, %p73
    %p75 = scmp.ne.s32.totalorder %s66, %s67
    %p76 = scmp.eq.s32.totalorder %s14, 0
    %p77 = por %p75, %p76
    %p78 = scmp.ne.s32.totalorder %s66, %s67
    %p79 = scmp.eq.s32.totalorder %s15, 1
    %p80 = por %p78, %p79
    %p82 = scmp.ne.s32.totalorder %s67, %s81
    %p83 = scmp.eq.s32.totalorder %s15, 0
    %p84 = por %p82, %p83
    %s85 = ssub.s32 %s9, %s16
    %p86 = scmp.eq.s32.totalorder %s85, 0
    %s88 = sadd.s32 %s87, 1
    %s89 = scalar_select %p86, %s87, %s88
    %p92 = pneg %p86
    %p93 = scmp.eq.s32.totalorder %s9, 1
    %p94 = por %p92, %p93
    %p95 = scmp.ne.s32.totalorder %s87, %s90
    %p96 = scmp.eq.s32.totalorder %s9, 0
    %p97 = por %p95, %p96
    %p98 = scmp.ne.s32.totalorder %s87, %s90
    %p99 = scmp.eq.s32.totalorder %s14, 1
    %p100 = por %p98, %p99
    %p101 = scmp.ne.s32.totalorder %s90, %s91
    %p102 = scmp.eq.s32.totalorder %s14, 0
    %p103 = por %p101, %p102
    %p104 = scmp.ne.s32.totalorder %s90, %s91
    %p105 = scmp.eq.s32.totalorder %s15, 1
    %p106 = por %p104, %p105
    %p108 = scmp.ne.s32.totalorder %s91, %s107
    %p109 = scmp.eq.s32.totalorder %s15, 0
    %p110 = por %p108, %p109
    %p111 = scmp.le.s32.totalorder 1, %s9
    %p112 = scmp.lt.s32.totalorder %s9, 3
    %p113 = pnand %p111, %p112
    %p114 = pneg %p113
    // Predicated region
    $region9: #{learnable_nlin_core.1} parent=5 // pred_check
      _
    $region10: #{learnable_nlin_core.1} parent=5 // pred_check_branch
      %116 = sbr.rel (%p113) target = $region12
    $region11: #{learnable_nlin_core.1} parent=5 // pred_region
      %s117 = ssub.s32 %s9, 1
      // Predicated region
      $region13: #{learnable_nlin_core.1} parent=11 // pred_check
        %p118 = pneg %p56
      $region14: #{learnable_nlin_core.1} parent=11 // pred_check_branch
        %120 = sbr.rel (%p118) target = $region16
      $region15: #{learnable_nlin_core.1} parent=11 // pred_region
        _
      $region16: #{learnable_nlin_core.1} parent=11 // pred_fallthru
        _
      // Predicated region
      $region17: #{learnable_nlin_core.1} parent=11 // pred_check
        %p121 = pneg %p77
      $region18: #{learnable_nlin_core.1} parent=11 // pred_check_branch
        %123 = sbr.rel (%p121) target = $region20
      $region19: #{learnable_nlin_core.1} parent=11 // pred_region
        _
      $region20: #{learnable_nlin_core.1} parent=11 // pred_fallthru
        _
    $region12: #{learnable_nlin_core.1} parent=5 // pred_fallthru
      _
    %p124 = scmp.lt.s32.totalorder %s9, 2
    // Predicated region
    $region21: #{learnable_nlin_core.1} parent=5 // pred_check
      %p125 = pneg %p124
    $region22: #{learnable_nlin_core.1} parent=5 // pred_check_branch
      %127 = sbr.rel (%p125) target = $region24
    $region23: #{learnable_nlin_core.1} parent=5 // pred_region
      // Predicated region
      $region25: #{learnable_nlin_core.1} parent=23 // pred_check
        %p128 = pneg %p29
      $region26: #{learnable_nlin_core.1} parent=23 // pred_check_branch
        %130 = sbr.rel (%p128) target = $region28
      $region27: #{learnable_nlin_core.1} parent=23 // pred_region
        %p131 = scmp.lt.s32.totalorder %s9, 1
        %s132 = scalar_select %p131, %s9, 1
        %s133 = smul.addr %s132, 8
        %s134 = scalar_lea.vmem %s0, %s133
      $region28: #{learnable_nlin_core.1} parent=23 // pred_fallthru
        _
    $region24: #{learnable_nlin_core.1} parent=5 // pred_fallthru
      _
    %p135 = scmp.le.s32.totalorder 1, %s9
    %p136 = scmp.lt.s32.totalorder %s9, 3
    %p137 = pnand %p135, %p136
    %p138 = pneg %p137
    // Predicated region
    $region29: #{learnable_nlin_core.1} parent=5 // pred_check
      _
    $region30: #{learnable_nlin_core.1} parent=5 // pred_check_branch
      %140 = sbr.rel (%p137) target = $region32
    $region31: #{learnable_nlin_core.1} parent=5 // pred_region
      %s141 = ssub.s32 %s9, 1
      %p142 = scmp.lt.s32.totalorder %s14, 1
      %s143 = scalar_select %p142, %s14, 1
      %s144 = smul.addr %s143, 8
      %s145 = scalar_lea.vmem %s0, %s144
      %p146 = pneg %p35
      %p147 = pneg %p32
      %p148 = pneg %p56
      %p149 = pneg %p53
      %p150 = pneg %p77
      %p151 = pneg %p74
      %p152 = pneg %p103
      %p153 = pneg %p100
      %p154 = scmp.lt.s32.totalorder %s14, 1
      %s155 = scalar_select %p154, %s14, 1
      %s156 = smul.addr %s155, 8
      %s157 = scalar_lea.vmem %s3, %s156
      %p158 = scmp.lt.s32.totalorder %s14, 1
      %s159 = scalar_select %p158, %s14, 1
      %s160 = smul.addr %s159, 8
      %s161 = scalar_lea.vmem %s0, %s160
      %p162 = scmp.lt.s32.totalorder %s14, 1
      %s163 = scalar_select %p162, %s14, 1
      %s164 = smul.addr %s163, 8
      %s165 = scalar_lea.vmem %s3, %s164
      %v166 = vld [vmem:[%s161] sm:$0xff]
      %v167 = vpack.c.bf16 %v166, %v166
      %v168 = vld [vmem:[%s1] sm:$0xf]
      %v169 = vld [vmem:[%s1 + $0x4] sm:$0xf]
      %v170 = vld [vmem:[%s1 + $0x8] sm:$0xf]
      %v171 = vld [vmem:[%s1 + $0xc] sm:$0xf]
      %v172 = vld [vmem:[%s1 + $0x10] sm:$0xf]
      %v173 = vld [vmem:[%s1 + $0x14] sm:$0xf]
      %v174 = vld [vmem:[%s1 + $0x18] sm:$0xf]
      %v175 = vld [vmem:[%s1 + $0x1c] sm:$0xf]
      %v176 = vld [vmem:[%s1 + $0x20] sm:$0xf]
      %v177 = vld [vmem:[%s1 + $0x24] sm:$0xf]
      %v178 = vld [vmem:[%s1 + $0x28] sm:$0xf]
      %v179 = vld [vmem:[%s1 + $0x2c] sm:$0xf]
      %v180 = vld [vmem:[%s1 + $0x30] sm:$0xf]
      %v181 = vld [vmem:[%s1 + $0x34] sm:$0xf]
      %v182 = vld [vmem:[%s1 + $0x38] sm:$0xf]
      %v183 = vld [vmem:[%s1 + $0x3c] sm:$0xf]
      %v184 = vld [vmem:[%s2] sm:$0x1]
      %v186 = vperm.slane %v184, 0
      %v204 = vunpack.c.l.b16 %v168
      %v205 = vunpack.c.l.b16 %v169
      %v206 = vunpack.c.l.b16 %v170
      %v207 = vunpack.c.l.b16 %v171
      %v208 = vunpack.c.l.b16 %v172
      %v209 = vunpack.c.l.b16 %v173
      %v210 = vunpack.c.l.b16 %v174
      %v211 = vunpack.c.l.b16 %v175
      %v212 = vunpack.c.l.b16 %v176
      %v213 = vunpack.c.l.b16 %v177
      %v214 = vunpack.c.l.b16 %v178
      %v215 = vunpack.c.l.b16 %v179
      %v216 = vunpack.c.l.b16 %v180
      %v217 = vunpack.c.l.b16 %v181
      %v218 = vunpack.c.l.b16 %v182
      %v219 = vunpack.c.l.b16 %v183
      %v220 = vpack.c.b16 %v205, %v204
      %v221 = vpack.c.b16 %v207, %v206
      %v222 = vpack.c.b16 %v209, %v208
      %v223 = vpack.c.b16 %v211, %v210
      %v224 = vpack.c.b16 %v213, %v212
      %v225 = vpack.c.b16 %v215, %v214
      %v226 = vpack.c.b16 %v217, %v216
      %v227 = vpack.c.b16 %v219, %v218
      %236 = vmatpush.bf16.msra.mxu0 %v227
      %237 = vmatpush.bf16.msra.mxu0 %v226
      %238 = vmatpush.bf16.msra.mxu0 %v225
      %239 = vmatpush.bf16.msra.mxu0 %v224
      %240 = vmatpush.bf16.msra.mxu0 %v223
      %241 = vmatpush.bf16.msra.mxu0 %v222
      %242 = vmatpush.bf16.msra.mxu0 %v221
      %243 = vmatpush.bf16.msra.mxu0 %v220
      %244 = vmatmul.bf16.gmra.mxu0 %v167
      %v245 = vpop.f32.mrf.mxu0
      %v246 = vadd.f32 %v186, %v245
      %v247 = vpop.f32.mrf.mxu0
      %248 = vdwg.mxu0
      %v249 = vmul.f32 %v246, 0.5
      %v250 = vtanh.pop %v249
      %v251 = vadd.f32 %v250, 1.0
      %v252 = vmul.f32 %v249, %v251
      %v253 = vpack.c.bf16 %v252, %v252
      %s254 = scalar_lea.vmem %s1, 64
      %v255 = vld [vmem:[%s254] sm:$0xf]
      %v256 = vld [vmem:[%s254 + $0x4] sm:$0xf]
      %v257 = vld [vmem:[%s254 + $0x8] sm:$0xf]
      %v258 = vld [vmem:[%s254 + $0xc] sm:$0xf]
      %v259 = vld [vmem:[%s254 + $0x10] sm:$0xf]
      %v260 = vld [vmem:[%s254 + $0x14] sm:$0xf]
      %v261 = vld [vmem:[%s254 + $0x18] sm:$0xf]
      %v262 = vld [vmem:[%s254 + $0x1c] sm:$0xf]
      %v263 = vld [vmem:[%s254 + $0x20] sm:$0xf]
      %v264 = vld [vmem:[%s254 + $0x24] sm:$0xf]
      %v265 = vld [vmem:[%s254 + $0x28] sm:$0xf]
      %v266 = vld [vmem:[%s254 + $0x2c] sm:$0xf]
      %v267 = vld [vmem:[%s254 + $0x30] sm:$0xf]
      %v268 = vld [vmem:[%s254 + $0x34] sm:$0xf]
      %v269 = vld [vmem:[%s254 + $0x38] sm:$0xf]
      %v270 = vld [vmem:[%s254 + $0x3c] sm:$0xf]
      %s271 = scalar_lea.vmem %s2, 1
      %v272 = vld [vmem:[%s271] sm:$0x1]
      %v274 = vperm.slane %v272, 0
      %v292 = vunpack.c.l.b16 %v255
      %v293 = vunpack.c.l.b16 %v256
      %v294 = vunpack.c.l.b16 %v257
      %v295 = vunpack.c.l.b16 %v258
      %v296 = vunpack.c.l.b16 %v259
      %v297 = vunpack.c.l.b16 %v260
      %v298 = vunpack.c.l.b16 %v261
      %v299 = vunpack.c.l.b16 %v262
      %v300 = vunpack.c.l.b16 %v263
      %v301 = vunpack.c.l.b16 %v264
      %v302 = vunpack.c.l.b16 %v265
      %v303 = vunpack.c.l.b16 %v266
      %v304 = vunpack.c.l.b16 %v267
      %v305 = vunpack.c.l.b16 %v268
      %v306 = vunpack.c.l.b16 %v269
      %v307 = vunpack.c.l.b16 %v270
      %v308 = vpack.c.b16 %v293, %v292
      %v309 = vpack.c.b16 %v295, %v294
      %v310 = vpack.c.b16 %v297, %v296
      %v311 = vpack.c.b16 %v299, %v298
      %v312 = vpack.c.b16 %v301, %v300
      %v313 = vpack.c.b16 %v303, %v302
      %v314 = vpack.c.b16 %v305, %v304
      %v315 = vpack.c.b16 %v307, %v306
      %324 = vmatpush.bf16.msra.mxu0 %v315
      %325 = vmatpush.bf16.msra.mxu0 %v314
      %326 = vmatpush.bf16.msra.mxu0 %v313
      %327 = vmatpush.bf16.msra.mxu0 %v312
      %328 = vmatpush.bf16.msra.mxu0 %v311
      %329 = vmatpush.bf16.msra.mxu0 %v310
      %330 = vmatpush.bf16.msra.mxu0 %v309
      %331 = vmatpush.bf16.msra.mxu0 %v308
      %332 = vmatmul.bf16.gmra.mxu0 %v253
      %v333 = vpop.f32.mrf.mxu0
      %v334 = vadd.f32 %v274, %v333
      %v335 = vpop.f32.mrf.mxu0
      %336 = vdwg.mxu0
      %v337 = vmul.f32 %v334, 0.5
      %v338 = vtanh.pop %v337
      %v339 = vadd.f32 %v338, 1.0
      %v340 = vmul.f32 %v337, %v339
      %v341 = vpack.c.bf16 %v340, %v340
      %s342 = scalar_lea.vmem %s1, 128
      %v343 = vld [vmem:[%s342] sm:$0xf]
      %v344 = vld [vmem:[%s342 + $0x4] sm:$0xf]
      %v345 = vld [vmem:[%s342 + $0x8] sm:$0xf]
      %v346 = vld [vmem:[%s342 + $0xc] sm:$0xf]
      %v347 = vld [vmem:[%s342 + $0x10] sm:$0xf]
      %v348 = vld [vmem:[%s342 + $0x14] sm:$0xf]
      %v349 = vld [vmem:[%s342 + $0x18] sm:$0xf]
      %v350 = vld [vmem:[%s342 + $0x1c] sm:$0xf]
      %v351 = vld [vmem:[%s342 + $0x20] sm:$0xf]
      %v352 = vld [vmem:[%s342 + $0x24] sm:$0xf]
      %v353 = vld [vmem:[%s342 + $0x28] sm:$0xf]
      %v354 = vld [vmem:[%s342 + $0x2c] sm:$0xf]
      %v355 = vld [vmem:[%s342 + $0x30] sm:$0xf]
      %v356 = vld [vmem:[%s342 + $0x34] sm:$0xf]
      %v357 = vld [vmem:[%s342 + $0x38] sm:$0xf]
      %v358 = vld [vmem:[%s342 + $0x3c] sm:$0xf]
      %s359 = scalar_lea.vmem %s2, 2
      %v360 = vld [vmem:[%s359] sm:$0x1]
      %v362 = vperm.slane %v360, 0
      %v380 = vunpack.c.l.b16 %v343
      %v381 = vunpack.c.l.b16 %v344
      %v382 = vunpack.c.l.b16 %v345
      %v383 = vunpack.c.l.b16 %v346
      %v384 = vunpack.c.l.b16 %v347
      %v385 = vunpack.c.l.b16 %v348
      %v386 = vunpack.c.l.b16 %v349
      %v387 = vunpack.c.l.b16 %v350
      %v388 = vunpack.c.l.b16 %v351
      %v389 = vunpack.c.l.b16 %v352
      %v390 = vunpack.c.l.b16 %v353
      %v391 = vunpack.c.l.b16 %v354
      %v392 = vunpack.c.l.b16 %v355
      %v393 = vunpack.c.l.b16 %v356
      %v394 = vunpack.c.l.b16 %v357
      %v395 = vunpack.c.l.b16 %v358
      %v396 = vpack.c.b16 %v381, %v380
      %v397 = vpack.c.b16 %v383, %v382
      %v398 = vpack.c.b16 %v385, %v384
      %v399 = vpack.c.b16 %v387, %v386
      %v400 = vpack.c.b16 %v389, %v388
      %v401 = vpack.c.b16 %v391, %v390
      %v402 = vpack.c.b16 %v393, %v392
      %v403 = vpack.c.b16 %v395, %v394
      %412 = vmatpush.bf16.msra.mxu0 %v403
      %413 = vmatpush.bf16.msra.mxu0 %v402
      %414 = vmatpush.bf16.msra.mxu0 %v401
      %415 = vmatpush.bf16.msra.mxu0 %v400
      %416 = vmatpush.bf16.msra.mxu0 %v399
      %417 = vmatpush.bf16.msra.mxu0 %v398
      %418 = vmatpush.bf16.msra.mxu0 %v397
      %419 = vmatpush.bf16.msra.mxu0 %v396
      %420 = vmatmul.bf16.gmra.mxu0 %v341
      %v421 = vpop.f32.mrf.mxu0
      %v422 = vadd.f32 %v362, %v421
      %v423 = vpop.f32.mrf.mxu0
      %424 = vdwg.mxu0
      %v425 = vmul.f32 %v422, 0.5
      %v426 = vtanh.pop %v425
      %v427 = vadd.f32 %v426, 1.0
      %v428 = vmul.f32 %v425, %v427
      %v429 = vpack.c.bf16 %v428, %v428
      %s430 = scalar_lea.vmem %s1, 192
      %v431 = vld [vmem:[%s430] sm:$0xf]
      %v432 = vld [vmem:[%s430 + $0x4] sm:$0xf]
      %v433 = vld [vmem:[%s430 + $0x8] sm:$0xf]
      %v434 = vld [vmem:[%s430 + $0xc] sm:$0xf]
      %v435 = vld [vmem:[%s430 + $0x10] sm:$0xf]
      %v436 = vld [vmem:[%s430 + $0x14] sm:$0xf]
      %v437 = vld [vmem:[%s430 + $0x18] sm:$0xf]
      %v438 = vld [vmem:[%s430 + $0x1c] sm:$0xf]
      %v439 = vld [vmem:[%s430 + $0x20] sm:$0xf]
      %v440 = vld [vmem:[%s430 + $0x24] sm:$0xf]
      %v441 = vld [vmem:[%s430 + $0x28] sm:$0xf]
      %v442 = vld [vmem:[%s430 + $0x2c] sm:$0xf]
      %v443 = vld [vmem:[%s430 + $0x30] sm:$0xf]
      %v444 = vld [vmem:[%s430 + $0x34] sm:$0xf]
      %v445 = vld [vmem:[%s430 + $0x38] sm:$0xf]
      %v446 = vld [vmem:[%s430 + $0x3c] sm:$0xf]
      %s447 = scalar_lea.vmem %s2, 3
      %v448 = vld [vmem:[%s447] sm:$0x1]
      %v450 = vperm.slane %v448, 0
      %v468 = vunpack.c.l.b16 %v431
      %v469 = vunpack.c.l.b16 %v432
      %v470 = vunpack.c.l.b16 %v433
      %v471 = vunpack.c.l.b16 %v434
      %v472 = vunpack.c.l.b16 %v435
      %v473 = vunpack.c.l.b16 %v436
      %v474 = vunpack.c.l.b16 %v437
      %v475 = vunpack.c.l.b16 %v438
      %v476 = vunpack.c.l.b16 %v439
      %v477 = vunpack.c.l.b16 %v440
      %v478 = vunpack.c.l.b16 %v441
      %v479 = vunpack.c.l.b16 %v442
      %v480 = vunpack.c.l.b16 %v443
      %v481 = vunpack.c.l.b16 %v444
      %v482 = vunpack.c.l.b16 %v445
      %v483 = vunpack.c.l.b16 %v446
      %v484 = vpack.c.b16 %v469, %v468
      %v485 = vpack.c.b16 %v471, %v470
      %v486 = vpack.c.b16 %v473, %v472
      %v487 = vpack.c.b16 %v475, %v474
      %v488 = vpack.c.b16 %v477, %v476
      %v489 = vpack.c.b16 %v479, %v478
      %v490 = vpack.c.b16 %v481, %v480
      %v491 = vpack.c.b16 %v483, %v482
      %500 = vmatpush.bf16.msra.mxu0 %v491
      %501 = vmatpush.bf16.msra.mxu0 %v490
      %502 = vmatpush.bf16.msra.mxu0 %v489
      %503 = vmatpush.bf16.msra.mxu0 %v488
      %504 = vmatpush.bf16.msra.mxu0 %v487
      %505 = vmatpush.bf16.msra.mxu0 %v486
      %506 = vmatpush.bf16.msra.mxu0 %v485
      %507 = vmatpush.bf16.msra.mxu0 %v484
      %508 = vmatmul.bf16.gmra.mxu0 %v429
      %v509 = vpop.f32.mrf.mxu0
      %v510 = vadd.f32 %v450, %v509
      %v511 = vpop.f32.mrf.mxu0
      %512 = vdwg.mxu0
      %v513 = vmul.f32 %v510, 0.5
      %v514 = vtanh.pop %v513
      %v515 = vadd.f32 %v514, 1.0
      %v516 = vmul.f32 %v513, %v515
      %v517 = vpack.c.bf16 %v516, %v516
      %s518 = scalar_lea.vmem %s1, 256
      %v519 = vld [vmem:[%s518] sm:$0xf]
      %v520 = vld [vmem:[%s518 + $0x4] sm:$0xf]
      %v521 = vld [vmem:[%s518 + $0x8] sm:$0xf]
      %v522 = vld [vmem:[%s518 + $0xc] sm:$0xf]
      %v523 = vld [vmem:[%s518 + $0x10] sm:$0xf]
      %v524 = vld [vmem:[%s518 + $0x14] sm:$0xf]
      %v525 = vld [vmem:[%s518 + $0x18] sm:$0xf]
      %v526 = vld [vmem:[%s518 + $0x1c] sm:$0xf]
      %v527 = vld [vmem:[%s518 + $0x20] sm:$0xf]
      %v528 = vld [vmem:[%s518 + $0x24] sm:$0xf]
      %v529 = vld [vmem:[%s518 + $0x28] sm:$0xf]
      %v530 = vld [vmem:[%s518 + $0x2c] sm:$0xf]
      %v531 = vld [vmem:[%s518 + $0x30] sm:$0xf]
      %v532 = vld [vmem:[%s518 + $0x34] sm:$0xf]
      %v533 = vld [vmem:[%s518 + $0x38] sm:$0xf]
      %v534 = vld [vmem:[%s518 + $0x3c] sm:$0xf]
      %s535 = scalar_lea.vmem %s2, 4
      %v536 = vld [vmem:[%s535] sm:$0x1]
      %v538 = vperm.slane %v536, 0
      %v556 = vunpack.c.l.b16 %v519
      %v557 = vunpack.c.l.b16 %v520
      %v558 = vunpack.c.l.b16 %v521
      %v559 = vunpack.c.l.b16 %v522
      %v560 = vunpack.c.l.b16 %v523
      %v561 = vunpack.c.l.b16 %v524
      %v562 = vunpack.c.l.b16 %v525
      %v563 = vunpack.c.l.b16 %v526
      %v564 = vunpack.c.l.b16 %v527
      %v565 = vunpack.c.l.b16 %v528
      %v566 = vunpack.c.l.b16 %v529
      %v567 = vunpack.c.l.b16 %v530
      %v568 = vunpack.c.l.b16 %v531
      %v569 = vunpack.c.l.b16 %v532
      %v570 = vunpack.c.l.b16 %v533
      %v571 = vunpack.c.l.b16 %v534
      %v572 = vpack.c.b16 %v557, %v556
      %v573 = vpack.c.b16 %v559, %v558
      %v574 = vpack.c.b16 %v561, %v560
      %v575 = vpack.c.b16 %v563, %v562
      %v576 = vpack.c.b16 %v565, %v564
      %v577 = vpack.c.b16 %v567, %v566
      %v578 = vpack.c.b16 %v569, %v568
      %v579 = vpack.c.b16 %v571, %v570
      %588 = vmatpush.bf16.msra.mxu0 %v579
      %589 = vmatpush.bf16.msra.mxu0 %v578
      %590 = vmatpush.bf16.msra.mxu0 %v577
      %591 = vmatpush.bf16.msra.mxu0 %v576
      %592 = vmatpush.bf16.msra.mxu0 %v575
      %593 = vmatpush.bf16.msra.mxu0 %v574
      %594 = vmatpush.bf16.msra.mxu0 %v573
      %595 = vmatpush.bf16.msra.mxu0 %v572
      %596 = vmatmul.bf16.gmra.mxu0 %v517
      %v597 = vpop.f32.mrf.mxu0
      %v598 = vadd.f32 %v538, %v597
      %v599 = vpop.f32.mrf.mxu0
      %600 = vdwg.mxu0
      %v601 = vmul.f32 %v598, 0.5
      %v602 = vtanh.pop %v601
      %v603 = vadd.f32 %v602, 1.0
      %v604 = vmul.f32 %v601, %v603
      %605 = vst [vmem:[%s165] sm:$0xff] %v604
      %p606 = scmp.lt.s32.totalorder %s14, 1
      %s607 = scalar_select %p606, %s14, 1
      %s608 = smul.addr %s607, 8
      %s609 = scalar_lea.vmem %s3, %s608
      // Predicated region
      $region33: #{learnable_nlin_core.1} parent=31 // pred_check
        %p610 = pneg %p100
      $region34: #{learnable_nlin_core.1} parent=31 // pred_check_branch
        %612 = sbr.rel (%p610) target = $region36
      $region35: #{learnable_nlin_core.1} parent=31 // pred_region
        _
      $region36: #{learnable_nlin_core.1} parent=31 // pred_fallthru
        _
    $region32: #{learnable_nlin_core.1} parent=5 // pred_fallthru
      _
    %p613 = scmp.le.s32.totalorder 2, %s9
    // Predicated region
    $region37: #{learnable_nlin_core.1} parent=5 // pred_check
      %p614 = pneg %p613
    $region38: #{learnable_nlin_core.1} parent=5 // pred_check_branch
      %616 = sbr.rel (%p614) target = $region40
    $region39: #{learnable_nlin_core.1} parent=5 // pred_region
      %s617 = ssub.s32 %s9, 2
      // Predicated region
      $region41: #{learnable_nlin_core.1} parent=39 // pred_check
        %p618 = pneg %p106
      $region42: #{learnable_nlin_core.1} parent=39 // pred_check_branch
        %620 = sbr.rel (%p618) target = $region44
      $region43: #{learnable_nlin_core.1} parent=39 // pred_region
        %p621 = scmp.lt.s32.totalorder %s15, 1
        %s622 = scalar_select %p621, %s15, 1
        %s623 = smul.addr %s622, 8
        %s624 = scalar_lea.vmem %s3, %s623
      $region44: #{learnable_nlin_core.1} parent=39 // pred_fallthru
        _
    $region40: #{learnable_nlin_core.1} parent=5 // pred_fallthru
      _
  $region6: #{learnable_nlin_core.1} parent=0 // loop_footer
    %s13 = sadd.s32 1, %s9
  $region7: #{learnable_nlin_core.1} parent=0 // loop_footer_branch
    %8 = sbr.rel target = $region3
  $region8: #{learnable_nlin_core.1} parent=0 // loop_exit
    _

</llo_original>
